<compile_context>
chip_gen: v7x
topology: tpu7x:2x2x1
jax: 0.10.0
libtpu: 0.0.40
codegen_flags: <defaults>
</compile_context>

<pallas_src>
import jax
import jax.numpy as jnp
from jax import lax
from jax.experimental import pallas as pl
from jax.experimental.pallas import tpu as pltpu


def _add_noise_kernel(k_ref, w_ref, n_ref, len_ref, o_ref):
    """k_ref: SMEM (1,) f32 = 10**(-snr_db/20);  w/n/o: VMEM (cC, T) f32;
    len_ref: VMEM (cC, 1) i32."""
    w = w_ref[...]                                            # (cC, T)
    n = n_ref[...]                                            # (cC, T)
    cC, T = w.shape

    # valid[c, t] = t < lengths[c]
    t_idx = lax.broadcasted_iota(jnp.int32, (cC, T), 1)
    valid = t_idx < len_ref[...]                              # (cC, T) bool

    # per-channel masked energies (select, reduction over the lane/time axis)
    e_sig = jnp.sum(jnp.where(valid, w * w, 0.0), axis=-1, keepdims=True)    # (cC, 1)
    e_noise = jnp.sum(jnp.where(valid, n * n, 0.0), axis=-1, keepdims=True)  # (cC, 1)

    # scale = 10**((10*(log10 e_s - log10 e_n) - snr)/20) == sqrt(e_s/e_n) * 10**(-snr/20)
    scale = jnp.sqrt(e_sig) * lax.rsqrt(e_noise) * k_ref[0]   # (cC, 1)

    o_ref[...] = w + scale * n


def _pick_channel_tile(C, T, itemsize=4, budget_bytes=24 << 20):
    """Pick a channel-tile so 3 streams x 2 pipeline buffers fit the VMEM budget
    (sized for v7x's 64 MiB physical / 32 MiB scoped VMEM)."""
    max_rows = max(1, budget_bytes // (6 * T * itemsize))
    if C <= max_rows:
        return C                       # whole channel extent in one block
    if C % 8 != 0:
        return C                       # full-dim block is always layout-legal
    # largest multiple of 8 that divides C and fits the budget
    cC = 8
    cand = 8
    while cand <= max_rows:
        if C % cand == 0:
            cC = cand
        cand += 8
    # TODO(synk): if even 8 rows exceed the budget (extremely long T), a two-phase
    # time-tiled reduction would be needed; not required at these sizes.
    return cC


def add_random_noise(waveform, noise, snr_db, lengths=None):
    """Pallas TPU implementation of torchaudio.functional.add_noise.

    waveform: (C, T) f32, noise: (C, T) f32, snr_db: scalar (dB),
    lengths: optional (C,) int32 (valid samples per channel).
    """
    C, T = waveform.shape
    waveform = waveform.astype(jnp.float32)
    noise = noise.astype(jnp.float32)
    if lengths is None:
        lengths = jnp.full((C,), T, dtype=jnp.int32)
    lengths2d = lengths.astype(jnp.int32).reshape(C, 1)

    # Per-call scalar 10**(-snr/20), scalar-prefetched into SMEM.
    k = jnp.power(jnp.float32(10.0),
                  -jnp.asarray(snr_db, dtype=jnp.float32) / 20.0).reshape(1)

    cC = _pick_channel_tile(C, T)
    grid = (pl.cdiv(C, cC),)

    grid_spec = pltpu.PrefetchScalarGridSpec(
        num_scalar_prefetch=1,
        grid=grid,
        in_specs=[
            pl.BlockSpec((cC, T), lambda i, k_ref: (i, 0)),   # waveform
            pl.BlockSpec((cC, T), lambda i, k_ref: (i, 0)),   # noise
            pl.BlockSpec((cC, 1), lambda i, k_ref: (i, 0)),   # lengths
        ],
        out_specs=pl.BlockSpec((cC, T), lambda i, k_ref: (i, 0)),
    )

    return pl.pallas_call(
        _add_noise_kernel,
        out_shape=jax.ShapeDtypeStruct((C, T), jnp.float32),
        grid_spec=grid_spec,
        # waveform (input index 1, after the 1 scalar-prefetch arg) aliases the output.
        input_output_aliases={1: 0},
        compiler_params=pltpu.CompilerParams(
            dimension_semantics=("parallel",),
            vmem_limit_bytes=32 * 1024 * 1024,
        ),
    )(k, waveform, noise, lengths2d)


if __name__ == "__main__":
    # Small, deterministic example: 8 channels, 2048 samples each,
    # SNR drawn uniformly from snr_range=(5, 15) dB.
    C, T = 8, 2048
    snr_range = (5.0, 15.0)

    key = jax.random.PRNGKey(0)
    k_wave, k_noise, k_snr = jax.random.split(key, 3)

    waveform = jax.random.normal(k_wave, (C, T), dtype=jnp.float32)
    # TODO(synk): noise-file loading (os.listdir + torchaudio.load) has no Pallas
    # equivalent; a deterministic synthetic noise waveform is used instead.
    noise = 0.5 * jax.random.normal(k_noise, (C, T), dtype=jnp.float32)
    snr_db = jax.random.uniform(
        k_snr, (), minval=snr_range[0], maxval=snr_range[1], dtype=jnp.float32
    )
    lengths = jnp.array([2048, 2000, 1800, 1500, 1200, 1024, 900, 700], dtype=jnp.int32)

    # Pure-JAX reference of torchaudio.functional.add_noise, computed before the
    # kernel call (the kernel aliases the waveform buffer to its output).
    mask = (jnp.arange(T)[None, :] < lengths[:, None]).astype(jnp.float32)
    e_s = jnp.sum((waveform * mask) ** 2, axis=-1)
    e_n = jnp.sum((noise * mask) ** 2, axis=-1)
    orig = 10.0 * (jnp.log10(e_s) - jnp.log10(e_n))
    scale = 10.0 ** ((orig - snr_db) / 20.0)
    ref = jax.block_until_ready(waveform + scale[:, None] * noise)

    out = add_random_noise(waveform, noise, snr_db, lengths)
    out = jax.block_until_ready(out)

    assert jnp.max(jnp.abs(out - ref)) < 1e-3, "mismatch vs reference"
    print("KERNEL_OK")
</pallas_src>

<mosaic_0001>
module attributes {stable_mosaic.version = 11 : i64} {
  func.func @_add_noise_kernel(%arg0: i32, %arg1: memref<1xf32, #tpu.memory_space<smem>>, %arg2: memref<8x2048xf32, #tpu.memory_space<vmem>>, %arg3: memref<8x2048xf32, #tpu.memory_space<vmem>>, %arg4: memref<8x1xi32, #tpu.memory_space<vmem>>, %arg5: memref<8x2048xf32, #tpu.memory_space<vmem>>) attributes {dimension_semantics = [#tpu.dimension_semantics<parallel>], iteration_bounds = array<i64: 1>, scalar_prefetch = 1 : i64, scratch_operands = 0 : i64, tpu.core_type = #tpu.core_type<tc>, window_params = [{transform_indices = @transform_0, window_bounds = array<i64: 8, 2048>}, {transform_indices = @transform_1, window_bounds = array<i64: 8, 2048>}, {transform_indices = @transform_2, window_bounds = array<i64: 8, 1>}, {transform_indices = @transform_3, window_bounds = array<i64: 8, 2048>}]} {
    %c0 = arith.constant 0 : index
    %c0_0 = arith.constant 0 : index
    %0 = vector.load %arg2[%c0, %c0_0] : memref<8x2048xf32, #tpu.memory_space<vmem>>, vector<8x2048xf32>
    %c0_1 = arith.constant 0 : index
    %c0_2 = arith.constant 0 : index
    %1 = vector.load %arg3[%c0_1, %c0_2] : memref<8x2048xf32, #tpu.memory_space<vmem>>, vector<8x2048xf32>
    %2 = tpu.iota {dimensions = array<i32: 1>} : vector<8x2048xi32>
    %c0_3 = arith.constant 0 : index
    %c0_4 = arith.constant 0 : index
    %3 = vector.load %arg4[%c0_3, %c0_4] : memref<8x1xi32, #tpu.memory_space<vmem>>, vector<8x1xi32>
    %4 = vector.broadcast %3 : vector<8x1xi32> to vector<8x2048xi32>
    %5 = arith.cmpi slt, %2, %4 : vector<8x2048xi32>
    %6 = arith.mulf %0, %0 : vector<8x2048xf32>
    %cst = arith.constant 0.000000e+00 : f32
    %7 = vector.broadcast %cst : f32 to vector<8x2048xf32>
    %8 = arith.select %5, %6, %7 : vector<8x2048xi1>, vector<8x2048xf32>
    %cst_5 = arith.constant dense<0.000000e+00> : vector<8xf32>
    %9 = vector.multi_reduction <add>, %8, %cst_5 [1] : vector<8x2048xf32> to vector<8xf32>
    %10 = vector.shape_cast %9 : vector<8xf32> to vector<8x1xf32>
    %11 = arith.mulf %1, %1 : vector<8x2048xf32>
    %cst_6 = arith.constant 0.000000e+00 : f32
    %12 = vector.broadcast %cst_6 : f32 to vector<8x2048xf32>
    %13 = arith.select %5, %11, %12 : vector<8x2048xi1>, vector<8x2048xf32>
    %cst_7 = arith.constant dense<0.000000e+00> : vector<8xf32>
    %14 = vector.multi_reduction <add>, %13, %cst_7 [1] : vector<8x2048xf32> to vector<8xf32>
    %15 = vector.shape_cast %14 : vector<8xf32> to vector<8x1xf32>
    %16 = math.sqrt %10 : vector<8x1xf32>
    %17 = math.rsqrt %15 : vector<8x1xf32>
    %18 = arith.mulf %16, %17 : vector<8x1xf32>
    %c0_8 = arith.constant 0 : index
    %19 = memref.load %arg1[%c0_8] : memref<1xf32, #tpu.memory_space<smem>>
    %20 = vector.broadcast %19 : f32 to vector<8x1xf32>
    %21 = arith.mulf %18, %20 : vector<8x1xf32>
    %22 = vector.broadcast %21 : vector<8x1xf32> to vector<8x2048xf32>
    %23 = arith.mulf %22, %1 : vector<8x2048xf32>
    %24 = arith.addf %0, %23 : vector<8x2048xf32>
    %c0_9 = arith.constant 0 : index
    %c0_10 = arith.constant 0 : index
    %25 = vector.load %arg5[%c0_9, %c0_10] : memref<8x2048xf32, #tpu.memory_space<vmem>>, vector<8x2048xf32>
    tpu.vector_store %arg5[%c0_9, %c0_10], %24 {strides = array<i32>} : memref<8x2048xf32, #tpu.memory_space<vmem>>, vector<8x2048xf32>,
    return
  }
  func.func @transform_0(%arg0: i32, %arg1: memref<1xf32, #tpu.memory_space<smem>>) -> (i32, i32) {
    %c0_i32 = arith.constant 0 : i32
    %c0_i32_0 = arith.constant 0 : i32
    return %arg0, %c0_i32 : i32, i32
  }
  func.func @transform_1(%arg0: i32, %arg1: memref<1xf32, #tpu.memory_space<smem>>) -> (i32, i32) {
    %c0_i32 = arith.constant 0 : i32
    %c0_i32_0 = arith.constant 0 : i32
    return %arg0, %c0_i32 : i32, i32
  }
  func.func @transform_2(%arg0: i32, %arg1: memref<1xf32, #tpu.memory_space<smem>>) -> (i32, i32) {
    %c0_i32 = arith.constant 0 : i32
    %c0_i32_0 = arith.constant 0 : i32
    return %arg0, %c0_i32 : i32, i32
  }
  func.func @transform_3(%arg0: i32, %arg1: memref<1xf32, #tpu.memory_space<smem>>) -> (i32, i32) {
    %c0_i32 = arith.constant 0 : i32
    %c0_i32_0 = arith.constant 0 : i32
    return %arg0, %c0_i32 : i32, i32
  }
}

</mosaic_0001>

<llo_original>
// kernel: tpu_custom_call.1
$region0: #{tpu_custom_call.1}
  #allocation0 [shape = 'u32[]', space=smem, size = 0x4, offset = 0x4, fixed_abs, tag = 'smem constant byte address 0x4 - core index']
  #allocation1 [shape = 'u32[144,128]{1,0:T(1,128)}', space=vmem, size = 0x12000, scoped, tag = 'internal scratch']
  #allocation2 [shape = 's32[1]{0}', space=sflag, size = 0x4, scoped, tag = 'scoped memory for tpu_custom_call.1']
  #allocation3 [shape = 'f32[1]{0:T(128)S(6)}', space=smem, size = 0x200, scoped, tag = 'prefetched SMEM operand 0']
  %s0 = inlined_call_operand.<no memory space> [shape: f32[1], index: 0, kind: input, shape index: {}]
  %s1 = inlined_call_operand.hbm [shape: f32[8,2048], index: 1, kind: input, shape index: {}, may-alias: {1,4}]
  %s2 = inlined_call_operand.vmem [shape: f32[8,2048], index: 2, kind: input, shape index: {}]
  %s3 = inlined_call_operand.vmem [shape: s32[8,1], index: 3, kind: input, shape index: {}]
  %s4 = inlined_call_operand.hbm [shape: f32[8,2048], index: 4, kind: output, shape index: {}, may-alias: {1,4}]
  %s5 = sld [smem:[#allocation0]]
  $region26: #{tpu_custom_call.1} parent=0
    _
  %s7 = ssub.s32 1, %s5
  %s8 = scalar_select 0, %s7, %s5
  %9 = sst [smem:[#allocation3]] %s0
  $region1: #{tpu_custom_call.1} parent=0
    #allocation4 [shape = 'u8[65536]{0}', space=vmem, size = 0x10000, scoped, tag = 'input window, operand 1, single buffered']
    #allocation5 [shape = 's32[1]{0}', space=sflag, size = 0x4, scoped, tag = 'scoped memory for tpu_custom_call.1']
    #allocation6 [shape = 's32[1]{0}', space=sflag, size = 0x4, scoped, tag = 'scoped memory for tpu_custom_call.1']
    #allocation7 [shape = 'u8[65536]{0}', space=vmem, size = 0x10000, scoped, tag = 'output window, operand 0, single buffered']
    %10 = vsyncpa [#allocation5], 0
    %11 = vsyncpa [#allocation6], 0
    // Predicated region
    $region2: #{tpu_custom_call.1} parent=1 // pred_check
      _
    $region3: #{tpu_custom_call.1} parent=1 // pred_check_branch
      %13 = sbr.rel (0) target = $region5
    $region4: #{tpu_custom_call.1} parent=1 // pred_region
      %s15 = ssub.s32 2048, 2048
      %16 = vsyncadd [#allocation5], %s15
      %s18 = sshll.u32 [#allocation4], 4
      %s19 = int_to_ptr.vmem [resolvable:$true] %s18
      %21 = dma.hbm_to_vmem [thread:$0]  %s1, 2048, %s19, [#allocation5]
    $region5: #{tpu_custom_call.1} parent=1 // pred_fallthru
      _
    // Predicated region
    $region6: #{tpu_custom_call.1} parent=1 // pred_check
      _
    $region7: #{tpu_custom_call.1} parent=1 // pred_check_branch
      %23 = sbr.rel (0) target = $region9
    $region8: #{tpu_custom_call.1} parent=1 // pred_region
      _
    $region9: #{tpu_custom_call.1} parent=1 // pred_fallthru
      _
    // Predicated region
    $region10: #{tpu_custom_call.1} parent=1 // pred_check
      _
    $region11: #{tpu_custom_call.1} parent=1 // pred_check_branch
      %25 = sbr.rel (0) target = $region13
    $region12: #{tpu_custom_call.1} parent=1 // pred_region
      _
    $region13: #{tpu_custom_call.1} parent=1 // pred_fallthru
      _
    // Predicated region
    $region14: #{tpu_custom_call.1} parent=1 // pred_check
      _
    $region15: #{tpu_custom_call.1} parent=1 // pred_check_branch
      %27 = sbr.rel (0) target = $region17
    $region16: #{tpu_custom_call.1} parent=1 // pred_region
      %28 = dma.done [#allocation5], 2048
    $region17: #{tpu_custom_call.1} parent=1 // pred_fallthru
      _
    %v29 = vld [vmem:[#allocation4] sm:$0xff]
    %v30 = vld [vmem:[#allocation4 + $0x8] sm:$0xff]
    %v31 = vld [vmem:[#allocation4 + $0x10] sm:$0xff]
    %v32 = vld [vmem:[#allocation4 + $0x18] sm:$0xff]
    %v33 = vld [vmem:[#allocation4 + $0x20] sm:$0xff]
    %v34 = vld [vmem:[#allocation4 + $0x28] sm:$0xff]
    %v35 = vld [vmem:[#allocation4 + $0x30] sm:$0xff]
    %v36 = vld [vmem:[#allocation4 + $0x38] sm:$0xff]
    %v37 = vld [vmem:[#allocation4 + $0x40] sm:$0xff]
    %v38 = vld [vmem:[#allocation4 + $0x48] sm:$0xff]
    %v39 = vld [vmem:[#allocation4 + $0x50] sm:$0xff]
    %v40 = vld [vmem:[#allocation4 + $0x58] sm:$0xff]
    %v41 = vld [vmem:[#allocation4 + $0x60] sm:$0xff]
    %v42 = vld [vmem:[#allocation4 + $0x68] sm:$0xff]
    %v43 = vld [vmem:[#allocation4 + $0x70] sm:$0xff]
    %v44 = vld [vmem:[#allocation4 + $0x78] sm:$0xff]
    %v45 = vld [vmem:[%s2] sm:$0xff]
    %v46 = vld [vmem:[%s2 + $0x8] sm:$0xff]
    %v47 = vld [vmem:[%s2 + $0x10] sm:$0xff]
    %v48 = vld [vmem:[%s2 + $0x18] sm:$0xff]
    %v49 = vld [vmem:[%s2 + $0x20] sm:$0xff]
    %v50 = vld [vmem:[%s2 + $0x28] sm:$0xff]
    %v51 = vld [vmem:[%s2 + $0x30] sm:$0xff]
    %v52 = vld [vmem:[%s2 + $0x38] sm:$0xff]
    %v53 = vld [vmem:[%s2 + $0x40] sm:$0xff]
    %v54 = vld [vmem:[%s2 + $0x48] sm:$0xff]
    %v55 = vld [vmem:[%s2 + $0x50] sm:$0xff]
    %v56 = vld [vmem:[%s2 + $0x58] sm:$0xff]
    %v57 = vld [vmem:[%s2 + $0x60] sm:$0xff]
    %v58 = vld [vmem:[%s2 + $0x68] sm:$0xff]
    %v59 = vld [vmem:[%s2 + $0x70] sm:$0xff]
    %v60 = vld [vmem:[%s2 + $0x78] sm:$0xff]
    %v61 = vlaneseq
    %v62 = vand.u32 %v61, 127
    %v63 = vadd.s32 %v62, 128
    %v64 = vadd.s32 %v62, 256
    %v65 = vadd.s32 %v62, 384
    %v66 = vadd.s32 %v62, 512
    %v67 = vadd.s32 %v62, 640
    %v68 = vadd.s32 %v62, 768
    %v69 = vadd.s32 %v62, 896
    %v70 = vadd.s32 %v62, 1024
    %v71 = vadd.s32 %v62, 1152
    %v72 = vadd.s32 %v62, 1280
    %v73 = vadd.s32 %v62, 1408
    %v74 = vadd.s32 %v62, 1536
    %v75 = vadd.s32 %v62, 1664
    %v76 = vadd.s32 %v62, 1792
    %v77 = vadd.s32 %v62, 1920
    %v78 = vld [vmem:[%s3] sm:$0xff]
    %79 = vset.pattern.permute.xlu0 0
    %80 = vperm.xlu0 %79, %v78
    %v81 = vpop.permute.xlu0 %80
    %vm82 = vcmp.lt.s32.totalorder %v62, %v81
    %vm83 = vcmp.lt.s32.totalorder %v63, %v81
    %vm84 = vcmp.lt.s32.totalorder %v64, %v81
    %vm85 = vcmp.lt.s32.totalorder %v65, %v81
    %vm86 = vcmp.lt.s32.totalorder %v66, %v81
    %vm87 = vcmp.lt.s32.totalorder %v67, %v81
    %vm88 = vcmp.lt.s32.totalorder %v68, %v81
    %vm89 = vcmp.lt.s32.totalorder %v69, %v81
    %vm90 = vcmp.lt.s32.totalorder %v70, %v81
    %vm91 = vcmp.lt.s32.totalorder %v71, %v81
    %vm92 = vcmp.lt.s32.totalorder %v72, %v81
    %vm93 = vcmp.lt.s32.totalorder %v73, %v81
    %vm94 = vcmp.lt.s32.totalorder %v74, %v81
    %vm95 = vcmp.lt.s32.totalorder %v75, %v81
    %vm96 = vcmp.lt.s32.totalorder %v76, %v81
    %vm97 = vcmp.lt.s32.totalorder %v77, %v81
    %v98 = vmul.f32 %v29, %v29
    %v99 = vmul.f32 %v30, %v30
    %v100 = vmul.f32 %v31, %v31
    %v101 = vmul.f32 %v32, %v32
    %v102 = vmul.f32 %v33, %v33
    %v103 = vmul.f32 %v34, %v34
    %v104 = vmul.f32 %v35, %v35
    %v105 = vmul.f32 %v36, %v36
    %v106 = vmul.f32 %v37, %v37
    %v107 = vmul.f32 %v38, %v38
    %v108 = vmul.f32 %v39, %v39
    %v109 = vmul.f32 %v40, %v40
    %v110 = vmul.f32 %v41, %v41
    %v111 = vmul.f32 %v42, %v42
    %v112 = vmul.f32 %v43, %v43
    %v113 = vmul.f32 %v44, %v44
    %v114 = vsel %vm82, %v98, 0.0
    %v115 = vsel %vm83, %v99, 0.0
    %v116 = vsel %vm84, %v100, 0.0
    %v117 = vsel %vm85, %v101, 0.0
    %v118 = vsel %vm86, %v102, 0.0
    %v119 = vsel %vm87, %v103, 0.0
    %v120 = vsel %vm88, %v104, 0.0
    %v121 = vsel %vm89, %v105, 0.0
    %v122 = vsel %vm90, %v106, 0.0
    %v123 = vsel %vm91, %v107, 0.0
    %v124 = vsel %vm92, %v108, 0.0
    %v125 = vsel %vm93, %v109, 0.0
    %v126 = vsel %vm94, %v110, 0.0
    %v127 = vsel %vm95, %v111, 0.0
    %v128 = vsel %vm96, %v112, 0.0
    %v129 = vsel %vm97, %v113, 0.0
    %v130 = vadd.f32 %v114, %v115
    %v131 = vadd.f32 %v130, %v116
    %v132 = vadd.f32 %v131, %v117
    %v133 = vadd.f32 %v132, %v118
    %v134 = vadd.f32 %v133, %v119
    %v135 = vadd.f32 %v134, %v120
    %v136 = vadd.f32 %v135, %v121
    %v137 = vadd.f32 %v136, %v122
    %v138 = vadd.f32 %v137, %v123
    %v139 = vadd.f32 %v138, %v124
    %v140 = vadd.f32 %v139, %v125
    %v141 = vadd.f32 %v140, %v126
    %v142 = vadd.f32 %v141, %v127
    %v143 = vadd.f32 %v142, %v128
    %v144 = vadd.f32 %v143, %v129
    %145 = vadd.xlane.f32.xlu0 %v144
    %v146 = vpop.xlane.xlu0 %145
    %v147 = vmul.f32 %v45, %v45
    %v148 = vmul.f32 %v46, %v46
    %v149 = vmul.f32 %v47, %v47
    %v150 = vmul.f32 %v48, %v48
    %v151 = vmul.f32 %v49, %v49
    %v152 = vmul.f32 %v50, %v50
    %v153 = vmul.f32 %v51, %v51
    %v154 = vmul.f32 %v52, %v52
    %v155 = vmul.f32 %v53, %v53
    %v156 = vmul.f32 %v54, %v54
    %v157 = vmul.f32 %v55, %v55
    %v158 = vmul.f32 %v56, %v56
    %v159 = vmul.f32 %v57, %v57
    %v160 = vmul.f32 %v58, %v58
    %v161 = vmul.f32 %v59, %v59
    %v162 = vmul.f32 %v60, %v60
    %v163 = vsel %vm82, %v147, 0.0
    %v164 = vsel %vm83, %v148, 0.0
    %v165 = vsel %vm84, %v149, 0.0
    %v166 = vsel %vm85, %v150, 0.0
    %v167 = vsel %vm86, %v151, 0.0
    %v168 = vsel %vm87, %v152, 0.0
    %v169 = vsel %vm88, %v153, 0.0
    %v170 = vsel %vm89, %v154, 0.0
    %v171 = vsel %vm90, %v155, 0.0
    %v172 = vsel %vm91, %v156, 0.0
    %v173 = vsel %vm92, %v157, 0.0
    %v174 = vsel %vm93, %v158, 0.0
    %v175 = vsel %vm94, %v159, 0.0
    %v176 = vsel %vm95, %v160, 0.0
    %v177 = vsel %vm96, %v161, 0.0
    %v178 = vsel %vm97, %v162, 0.0
    %v179 = vadd.f32 %v163, %v164
    %v180 = vadd.f32 %v179, %v165
    %v181 = vadd.f32 %v180, %v166
    %v182 = vadd.f32 %v181, %v167
    %v183 = vadd.f32 %v182, %v168
    %v184 = vadd.f32 %v183, %v169
    %v185 = vadd.f32 %v184, %v170
    %v186 = vadd.f32 %v185, %v171
    %v187 = vadd.f32 %v186, %v172
    %v188 = vadd.f32 %v187, %v173
    %v189 = vadd.f32 %v188, %v174
    %v190 = vadd.f32 %v189, %v175
    %v191 = vadd.f32 %v190, %v176
    %v192 = vadd.f32 %v191, %v177
    %v193 = vadd.f32 %v192, %v178
    %194 = vadd.xlane.f32.xlu0 %v193
    %v195 = vpop.xlane.xlu0 %194
    %v196 = vrsqrt.pop %v146
    %v197 = vmul.f32 %v146, %v196
    %vm198 = vcmp.eq.f32.partialorder %v146, inf
    %v199 = vsel %vm198, %v146, %v197
    %vm200 = vcmp.eq.f32.partialorder %v146, 0.0
    %v201 = vand.u32 %v146, 2147483648
    %v202 = vsel %vm200, %v201, %v199
    %v203 = vrsqrt.pop %v195
    %v204 = vmul.f32 %v202, %v203
    %s205 = sld [smem:[#allocation3]]
    %v206 = vstv %s205
    %v207 = vmul.f32 %v204, %v206
    %v208 = vmul.f32 %v207, %v45
    %v209 = vmul.f32 %v207, %v46
    %v210 = vmul.f32 %v207, %v47
    %v211 = vmul.f32 %v207, %v48
    %v212 = vmul.f32 %v207, %v49
    %v213 = vmul.f32 %v207, %v50
    %v214 = vmul.f32 %v207, %v51
    %v215 = vmul.f32 %v207, %v52
    %v216 = vmul.f32 %v207, %v53
    %v217 = vmul.f32 %v207, %v54
    %v218 = vmul.f32 %v207, %v55
    %v219 = vmul.f32 %v207, %v56
    %v220 = vmul.f32 %v207, %v57
    %v221 = vmul.f32 %v207, %v58
    %v222 = vmul.f32 %v207, %v59
    %v223 = vmul.f32 %v207, %v60
    %v224 = vadd.f32 %v29, %v208
    %v225 = vadd.f32 %v30, %v209
    %v226 = vadd.f32 %v31, %v210
    %v227 = vadd.f32 %v32, %v211
    %v228 = vadd.f32 %v33, %v212
    %v229 = vadd.f32 %v34, %v213
    %v230 = vadd.f32 %v35, %v214
    %v231 = vadd.f32 %v36, %v215
    %v232 = vadd.f32 %v37, %v216
    %v233 = vadd.f32 %v38, %v217
    %v234 = vadd.f32 %v39, %v218
    %v235 = vadd.f32 %v40, %v219
    %v236 = vadd.f32 %v41, %v220
    %v237 = vadd.f32 %v42, %v221
    %v238 = vadd.f32 %v43, %v222
    %v239 = vadd.f32 %v44, %v223
    %240 = vst [vmem:[#allocation7] sm:$0xff] %v224
    %241 = vst [vmem:[#allocation7 + $0x8] sm:$0xff] %v225
    %242 = vst [vmem:[#allocation7 + $0x10] sm:$0xff] %v226
    %243 = vst [vmem:[#allocation7 + $0x18] sm:$0xff] %v227
    %244 = vst [vmem:[#allocation7 + $0x20] sm:$0xff] %v228
    %245 = vst [vmem:[#allocation7 + $0x28] sm:$0xff] %v229
    %246 = vst [vmem:[#allocation7 + $0x30] sm:$0xff] %v230
    %247 = vst [vmem:[#allocation7 + $0x38] sm:$0xff] %v231
    %248 = vst [vmem:[#allocation7 + $0x40] sm:$0xff] %v232
    %249 = vst [vmem:[#allocation7 + $0x48] sm:$0xff] %v233
    %250 = vst [vmem:[#allocation7 + $0x50] sm:$0xff] %v234
    %251 = vst [vmem:[#allocation7 + $0x58] sm:$0xff] %v235
    %252 = vst [vmem:[#allocation7 + $0x60] sm:$0xff] %v236
    %253 = vst [vmem:[#allocation7 + $0x68] sm:$0xff] %v237
    %254 = vst [vmem:[#allocation7 + $0x70] sm:$0xff] %v238
    %255 = vst [vmem:[#allocation7 + $0x78] sm:$0xff] %v239
    // Predicated region
    $region18: #{tpu_custom_call.1} parent=1 // pred_check
      _
    $region19: #{tpu_custom_call.1} parent=1 // pred_check_branch
      %257 = sbr.rel (0) target = $region21
    $region20: #{tpu_custom_call.1} parent=1 // pred_region
      %s259 = ssub.s32 2048, 2048
      %260 = vsyncadd [#allocation6], %s259
      %s262 = sshll.u32 [#allocation7], 4
      %s263 = int_to_ptr.vmem [resolvable:$true] %s262
      %265 = dma.vmem_to_hbm [thread:$0]  %s263, 2048, %s4, [#allocation6]
    $region21: #{tpu_custom_call.1} parent=1 // pred_fallthru
      _
    // Predicated region
    $region22: #{tpu_custom_call.1} parent=1 // pred_check
      _
    $region23: #{tpu_custom_call.1} parent=1 // pred_check_branch
      %267 = sbr.rel (0) target = $region25
    $region24: #{tpu_custom_call.1} parent=1 // pred_region
      %268 = dma.done [#allocation6], 2048
    $region25: #{tpu_custom_call.1} parent=1 // pred_fallthru
      _
    %269 = vsyncpa [#allocation5], 1
    %270 = vsyncpa [#allocation6], 1

</llo_original>
